<compile_context>
chip_gen: v5e
topology: v5e:2x2
jax: 0.10.0
libtpu: 0.0.40
codegen_flags: <defaults>
</compile_context>

<pallas_src>
import functools

import jax
import jax.numpy as jnp
from jax.experimental import pallas as pl
from jax.experimental.pallas import tpu as pltpu


def _round_up(x: int, m: int) -> int:
    return ((x + m - 1) // m) * m


def _pick_row_tile(batch: int) -> int:
    # >=512-row tiles once the batch is large (MXU M-dim / pipeline efficiency);
    # otherwise a single 8-row-aligned tile.
    return 512 if batch >= 512 else _round_up(max(batch, 1), 8)


# --------------------------------------------------------------------------
# Kernel: one row-tile of the multi-hot matmul
#   out[tb, 128] = onehot(tb, P*V) @ table(P*V, 128) + bias(1, 128)
# --------------------------------------------------------------------------
def _encoder_kernel(flat_ids_ref, table_ref, bias_ref, out_ref):
    flat_ids = flat_ids_ref[...]                       # (TB, P) int32, in [0, P*V)
    tb, p_dim = flat_ids.shape
    pv = table_ref.shape[0]

    # Multi-hot row selector (P ones per row), built in 2-D on the VPU.
    iota = jax.lax.broadcasted_iota(jnp.int32, (tb, pv), 1)         # (TB, PV)
    onehot = (iota == flat_ids[:, 0:1]).astype(jnp.float32)
    for p in range(1, p_dim):                          # P tiny & static: unrolled
        onehot = onehot + (iota == flat_ids[:, p:p + 1]).astype(jnp.float32)

    # Single MXU matmul over the folded table (lane-dense N=128) + bias add.
    out_ref[...] = (
        jnp.dot(onehot, table_ref[...], preferred_element_type=jnp.float32)
        + bias_ref[...]
    )


# --------------------------------------------------------------------------
# One-time fold (model init) — NOT on the per-call path.
# --------------------------------------------------------------------------
def init_encoder_params(emb_table, w_inter, w_out, b_out, *, lane: int = 128):
    V, D = emb_table.shape
    Do, fan_in = w_out.shape
    P = fan_in // D
    assert fan_in == P * D and D == P, \
        "PyTorch forward requires d_model == n_principles"

    A = jnp.eye(P, dtype=jnp.float32) + w_inter.astype(jnp.float32)   # (I + W_int)
    EA = emb_table.astype(jnp.float32) @ A.T                          # (V, D)
    w3 = w_out.astype(jnp.float32).reshape(Do, P, D)                  # w3[o,p,d]
    # big_table[p*V + v, o] = sum_d EA[v, d] * w_out[o, p*D + d]
    big_table = jnp.einsum("vd,opd->pvo", EA, w3).reshape(P * V, Do)

    # Lane-dense padding of the output dimension (constant zero columns).
    do_pad = _round_up(Do, lane)
    table = jnp.zeros((P * V, do_pad), jnp.float32).at[:, :Do].set(big_table)
    bias = jnp.zeros((1, do_pad), jnp.float32).at[0, :Do].set(
        b_out.astype(jnp.float32))
    offsets = jnp.arange(P, dtype=jnp.int32) * V                      # per-principle

    return table, bias, offsets, Do


# --------------------------------------------------------------------------
# Per-call forward (jitted): id offsets -> pallas_call -> slice off padding.
# --------------------------------------------------------------------------
@functools.partial(jax.jit, static_argnames=("do_out",))
def ethical_principle_encode(principle_ids, table, bias, offsets, *, do_out):
    B, P = principle_ids.shape
    PV, do_pad = table.shape

    flat_ids = principle_ids.astype(jnp.int32) + offsets[None, :]     # (B, P)

    tb = _pick_row_tile(B)
    b_pad = _round_up(B, tb)
    if b_pad != B:
        # Pad rows with -1: matches nothing -> padded outputs are just bias,
        # and they are sliced off below.
        flat_ids = jnp.concatenate(
            [flat_ids, jnp.full((b_pad - B, P), -1, jnp.int32)], axis=0)

    out_pad = pl.pallas_call(
        _encoder_kernel,
        out_shape=jax.ShapeDtypeStruct((b_pad, do_pad), jnp.float32),
        grid_spec=pltpu.PrefetchScalarGridSpec(
            num_scalar_prefetch=0,
            grid=(b_pad // tb,),
            in_specs=[
                pl.BlockSpec((tb, P), lambda i: (i, 0)),      # ids: row-blocked
                pl.BlockSpec((PV, do_pad), lambda i: (0, 0)), # table: resident
                pl.BlockSpec((1, do_pad), lambda i: (0, 0)),  # bias: resident
            ],
            out_specs=pl.BlockSpec((tb, do_pad), lambda i: (i, 0)),
        ),
        compiler_params=pltpu.CompilerParams(
            dimension_semantics=("parallel",)),   # v7x dual-TC batch split
    )(flat_ids, table, bias)

    return out_pad[:B, :do_out]


# --------------------------------------------------------------------------
# Pure-JAX mirror of the PyTorch forward (same broadcasting as torch).
# --------------------------------------------------------------------------
def _reference(principle_ids, emb_table, w_inter, w_out, b_out):
    emb = emb_table[principle_ids]                               # (B, P, D)
    inter = jnp.matmul(w_inter, jnp.swapaxes(emb, -2, -1))       # (B, P, P)
    inter = jnp.swapaxes(inter, -2, -1)                          # (B, P, D)
    combined = emb + inter
    flat = combined.reshape(combined.shape[0], -1)
    return flat @ w_out.T + b_out


if __name__ == "__main__":
    B = 2
    n_principles = 4
    d_model = 4  # must equal n_principles for the PyTorch forward to be valid

    key = jax.random.PRNGKey(0)
    k_ids, k_emb, k_int, k_w, k_b = jax.random.split(key, 5)

    principle_ids = jax.random.randint(
        k_ids, (B, n_principles), 0, n_principles, dtype=jnp.int32)
    # nn.Embedding default init: N(0, 1)
    emb_table = jax.random.normal(k_emb, (n_principles, d_model), jnp.float32)
    # nn.Parameter(torch.randn(P, P))
    w_inter = jax.random.normal(k_int, (n_principles, n_principles), jnp.float32)
    # nn.Linear(d_model * n_principles, d_model): uniform(-1/sqrt(fan_in), +)
    fan_in = d_model * n_principles
    bound = 1.0 / (fan_in ** 0.5)
    w_out = jax.random.uniform(k_w, (d_model, fan_in), jnp.float32, -bound, bound)
    b_out = jax.random.uniform(k_b, (d_model,), jnp.float32, -bound, bound)

    # One-time fold at "model init" (off the per-call path).
    table, bias, offsets, do_out = init_encoder_params(
        emb_table, w_inter, w_out, b_out)
    table, bias, offsets = jax.block_until_ready((table, bias, offsets))

    out = ethical_principle_encode(
        principle_ids, table, bias, offsets, do_out=do_out)
    out = jax.block_until_ready(out)

    ref = _reference(principle_ids, emb_table, w_inter, w_out, b_out)
    assert out.shape == (B, d_model)
    # Fold re-associates f32 ops, so allow a slightly looser tolerance.
    assert jnp.allclose(out, ref, atol=1e-4, rtol=1e-4), "mismatch vs reference"

    print("KERNEL_OK")
</pallas_src>

<mosaic_0001>
module attributes {stable_mosaic.version = 11 : i64} {
  func.func @_encoder_kernel(%arg0: i32, %arg1: memref<8x4xi32, #tpu.memory_space<vmem>>, %arg2: memref<16x128xf32, #tpu.memory_space<vmem>>, %arg3: memref<1x128xf32, #tpu.memory_space<vmem>>, %arg4: memref<8x128xf32, #tpu.memory_space<vmem>>) attributes {dimension_semantics = [#tpu.dimension_semantics<parallel>], iteration_bounds = array<i64: 1>, scalar_prefetch = 0 : i64, scratch_operands = 0 : i64, tpu.core_type = #tpu.core_type<tc>, window_params = [{transform_indices = @transform_0, window_bounds = array<i64: 8, 4>}, {pipeline_mode = #tpu.pipeline_mode<synchronous>, transform_indices = @transform_1, window_bounds = array<i64: 16, 128>}, {pipeline_mode = #tpu.pipeline_mode<synchronous>, transform_indices = @transform_2, window_bounds = array<i64: 1, 128>}, {transform_indices = @transform_3, window_bounds = array<i64: 8, 128>}]} {
    %c0 = arith.constant 0 : index
    %c0_0 = arith.constant 0 : index
    %0 = vector.load %arg1[%c0, %c0_0] : memref<8x4xi32, #tpu.memory_space<vmem>>, vector<8x4xi32>
    %1 = tpu.iota {dimensions = array<i32: 1>} : vector<8x16xi32>
    %2 = vector.extract_strided_slice %0 {offsets = [0, 0], sizes = [8, 1], strides = [1, 1]} : vector<8x4xi32> to vector<8x1xi32>
    %3 = vector.broadcast %2 : vector<8x1xi32> to vector<8x16xi32>
    %4 = arith.cmpi eq, %1, %3 : vector<8x16xi32>
    %5 = arith.extui %4 : vector<8x16xi1> to vector<8x16xi32>
    %6 = arith.sitofp %5 : vector<8x16xi32> to vector<8x16xf32>
    %7 = vector.extract_strided_slice %0 {offsets = [0, 1], sizes = [8, 1], strides = [1, 1]} : vector<8x4xi32> to vector<8x1xi32>
    %8 = vector.broadcast %7 : vector<8x1xi32> to vector<8x16xi32>
    %9 = arith.cmpi eq, %1, %8 : vector<8x16xi32>
    %10 = arith.extui %9 : vector<8x16xi1> to vector<8x16xi32>
    %11 = arith.sitofp %10 : vector<8x16xi32> to vector<8x16xf32>
    %12 = arith.addf %6, %11 : vector<8x16xf32>
    %13 = vector.extract_strided_slice %0 {offsets = [0, 2], sizes = [8, 1], strides = [1, 1]} : vector<8x4xi32> to vector<8x1xi32>
    %14 = vector.broadcast %13 : vector<8x1xi32> to vector<8x16xi32>
    %15 = arith.cmpi eq, %1, %14 : vector<8x16xi32>
    %16 = arith.extui %15 : vector<8x16xi1> to vector<8x16xi32>
    %17 = arith.sitofp %16 : vector<8x16xi32> to vector<8x16xf32>
    %18 = arith.addf %12, %17 : vector<8x16xf32>
    %19 = vector.extract_strided_slice %0 {offsets = [0, 3], sizes = [8, 1], strides = [1, 1]} : vector<8x4xi32> to vector<8x1xi32>
    %20 = vector.broadcast %19 : vector<8x1xi32> to vector<8x16xi32>
    %21 = arith.cmpi eq, %1, %20 : vector<8x16xi32>
    %22 = arith.extui %21 : vector<8x16xi1> to vector<8x16xi32>
    %23 = arith.sitofp %22 : vector<8x16xi32> to vector<8x16xf32>
    %24 = arith.addf %18, %23 : vector<8x16xf32>
    %c0_1 = arith.constant 0 : index
    %c0_2 = arith.constant 0 : index
    %25 = vector.load %arg2[%c0_1, %c0_2] : memref<16x128xf32, #tpu.memory_space<vmem>>, vector<16x128xf32>
    %cst = arith.constant dense<0.000000e+00> : vector<8x128xf32>
    %26 = tpu.matmul %24, %25, %cst {dimension_numbers = #tpu.dot_dimension_numbers<[1], [0], [0], [1], [0, 0, 1, 1], [], []>} : vector<8x16xf32>, vector<16x128xf32>, vector<8x128xf32> -> vector<8x128xf32>
    %c0_3 = arith.constant 0 : index
    %c0_4 = arith.constant 0 : index
    %27 = vector.load %arg3[%c0_3, %c0_4] : memref<1x128xf32, #tpu.memory_space<vmem>>, vector<1x128xf32>
    %28 = vector.broadcast %27 : vector<1x128xf32> to vector<8x128xf32>
    %29 = arith.addf %26, %28 : vector<8x128xf32>
    %c0_5 = arith.constant 0 : index
    %c0_6 = arith.constant 0 : index
    %30 = vector.load %arg4[%c0_5, %c0_6] : memref<8x128xf32, #tpu.memory_space<vmem>>, vector<8x128xf32>
    tpu.vector_store %arg4[%c0_5, %c0_6], %29 {strides = array<i32>} : memref<8x128xf32, #tpu.memory_space<vmem>>, vector<8x128xf32>,
    return
  }
  func.func @transform_0(%arg0: i32) -> (i32, i32) {
    %c0_i32 = arith.constant 0 : i32
    %c0_i32_0 = arith.constant 0 : i32
    return %arg0, %c0_i32 : i32, i32
  }
  func.func @transform_1(%arg0: i32) -> (i32, i32) {
    %c0_i32 = arith.constant 0 : i32
    %c0_i32_0 = arith.constant 0 : i32
    %c0_i32_1 = arith.constant 0 : i32
    return %c0_i32, %c0_i32_0 : i32, i32
  }
  func.func @transform_2(%arg0: i32) -> (i32, i32) {
    %c0_i32 = arith.constant 0 : i32
    %c0_i32_0 = arith.constant 0 : i32
    %c0_i32_1 = arith.constant 0 : i32
    return %c0_i32, %c0_i32_0 : i32, i32
  }
  func.func @transform_3(%arg0: i32) -> (i32, i32) {
    %c0_i32 = arith.constant 0 : i32
    %c0_i32_0 = arith.constant 0 : i32
    return %arg0, %c0_i32 : i32, i32
  }
}

</mosaic_0001>

<llo_original>
// kernel: ethical_principle_encode.1
$region0: #{ethical_principle_encode.1}
  #allocation0 [shape = 'u32[]', space=smem, size = 0x4, offset = 0x4, fixed_abs, tag = 'smem constant byte address 0x4 - core index']
  #allocation1 [shape = 'u32[72,128]{1,0:T(1,128)}', space=vmem, size = 0x9000, scoped, tag = 'internal scratch']
  %s0 = inlined_call_operand.vmem [shape: s32[8,4], index: 0, kind: input, shape index: {}]
  %s1 = inlined_call_operand.vmem [shape: f32[16,128], index: 1, kind: input, shape index: {}]
  %s2 = inlined_call_operand.hbm [shape: f32[1,128], index: 2, kind: input, shape index: {}]
  %s3 = inlined_call_operand.vmem [shape: f32[8,128], index: 3, kind: output, shape index: {}]
  %s4 = sld [smem:[#allocation0]]
  $region26: #{ethical_principle_encode.1} parent=0
    _
  %s6 = ssub.s32 1, %s4
  %s7 = scalar_select 0, %s6, %s4
  $region1: #{ethical_principle_encode.1} parent=0
    #allocation2 [shape = 'u8[512]{0}', space=vmem, size = 0x400, scoped, tag = 'input window, operand 2, single buffered']
    #allocation3 [shape = 's32[1]{0}', space=sflag, size = 0x4, scoped, tag = 'scoped memory for ethical_principle_encode.1']
    %8 = vsyncpa [#allocation3], 0
    // Predicated region
    $region2: #{ethical_principle_encode.1} parent=1 // pred_check
      _
    $region3: #{ethical_principle_encode.1} parent=1 // pred_check_branch
      %10 = sbr.rel (0) target = $region5
    $region4: #{ethical_principle_encode.1} parent=1 // pred_region
      _
    $region5: #{ethical_principle_encode.1} parent=1 // pred_fallthru
      _
    // Predicated region
    $region6: #{ethical_principle_encode.1} parent=1 // pred_check
      _
    $region7: #{ethical_principle_encode.1} parent=1 // pred_check_branch
      %12 = sbr.rel (0) target = $region9
    $region8: #{ethical_principle_encode.1} parent=1 // pred_region
      _
    $region9: #{ethical_principle_encode.1} parent=1 // pred_fallthru
      _
    // Predicated region
    $region10: #{ethical_principle_encode.1} parent=1 // pred_check
      _
    $region11: #{ethical_principle_encode.1} parent=1 // pred_check_branch
      %14 = sbr.rel (0) target = $region13
    $region12: #{ethical_principle_encode.1} parent=1 // pred_region
      %16 = vsyncadd [#allocation3], 0
      %s18 = sshll.u32 %s2, 4
      %s19 = int_to_ptr.hbm [resolvable:$true] %s18
      %s20 = sshll.u32 [#allocation2], 4
      %s21 = int_to_ptr.vmem [resolvable:$true] %s20
      %23 = dma.hbm_to_vmem [thread:$0]  %s19, 16, %s21, [#allocation3]
    $region13: #{ethical_principle_encode.1} parent=1 // pred_fallthru
      _
    // Predicated region
    $region14: #{ethical_principle_encode.1} parent=1 // pred_check
      _
    $region15: #{ethical_principle_encode.1} parent=1 // pred_check_branch
      %25 = sbr.rel (0) target = $region17
    $region16: #{ethical_principle_encode.1} parent=1 // pred_region
      %27 = dma.done [#allocation3], 16
    $region17: #{ethical_principle_encode.1} parent=1 // pred_fallthru
      _
    %v28 = vld [vmem:[%s0] sm:$0xff]
    %v29 = vlaneseq
    %v30 = vand.u32 %v29, 127
    %31 = vset.pattern.permute.xlu0 0
    %32 = vperm.xlu0 %31, %v28
    %v33 = vpop.permute.xlu0 %32
    %vm34 = vcmp.eq.s32.totalorder %v30, %v33
    %v35 = vsel %vm34, 1, 0
    %v36 = vcvt.s32.f32 %v35
    %37 = vset.pattern.permute.xlu0 1
    %38 = vperm.xlu0 %37, %v28
    %v39 = vpop.permute.xlu0 %38
    %vm40 = vcmp.eq.s32.totalorder %v30, %v39
    %v41 = vsel %vm40, 1, 0
    %v42 = vcvt.s32.f32 %v41
    %v43 = vadd.f32 %v36, %v42
    %44 = vset.pattern.permute.xlu0 2
    %45 = vperm.xlu0 %44, %v28
    %v46 = vpop.permute.xlu0 %45
    %vm47 = vcmp.eq.s32.totalorder %v30, %v46
    %v48 = vsel %vm47, 1, 0
    %v49 = vcvt.s32.f32 %v48
    %v50 = vadd.f32 %v43, %v49
    %51 = vset.pattern.permute.xlu0 3
    %52 = vperm.xlu0 %51, %v28
    %v53 = vpop.permute.xlu0 %52
    %vm54 = vcmp.eq.s32.totalorder %v30, %v53
    %v55 = vsel %vm54, 1, 0
    %v56 = vcvt.s32.f32 %v55
    %v57 = vadd.f32 %v50, %v56
    %v58 = vld [vmem:[%s1] sm:$0xff]
    %v59 = vld [vmem:[%s1 + $0x8] sm:$0xff]
    %v60 = vld [vmem:[#allocation2] sm:$0x1]
    %v62 = vperm.slane %v60, 0
    %vm64 = vcmask 130048
    %v66 = vsel %vm64, %v57, 0
    %68 = vmatpush.msra.mxu0 0.0
    %69 = vmatpush.msra.mxu0 0.0
    %70 = vmatpush.msra.mxu0 0.0
    %71 = vmatpush.msra.mxu0 0.0
    %72 = vmatpush.msra.mxu0 0.0
    %73 = vmatpush.msra.mxu0 0.0
    %74 = vmatpush.msra.mxu0 0.0
    %75 = vmatpush.msra.mxu0 0.0
    %76 = vmatpush.msra.mxu0 0.0
    %77 = vmatpush.msra.mxu0 0.0
    %78 = vmatpush.msra.mxu0 0.0
    %79 = vmatpush.msra.mxu0 0.0
    %80 = vmatpush.msra.mxu0 0.0
    %81 = vmatpush.msra.mxu0 0.0
    %82 = vmatpush.msra.mxu0 %v59
    %83 = vmatpush.msra.mxu0 %v58
    %84 = vmatmul.f32.gmra.mxu0 %v66
    %v85 = vpop.f32.mrf.mxu0
    %v86 = vadd.f32 %v62, %v85
    %87 = vdwg.mxu0
    %88 = vst [vmem:[%s3] sm:$0xff] %v86
    // Predicated region
    $region18: #{ethical_principle_encode.1} parent=1 // pred_check
      _
    $region19: #{ethical_principle_encode.1} parent=1 // pred_check_branch
      %90 = sbr.rel (0) target = $region21
    $region20: #{ethical_principle_encode.1} parent=1 // pred_region
      _
    $region21: #{ethical_principle_encode.1} parent=1 // pred_fallthru
      _
    // Predicated region
    $region22: #{ethical_principle_encode.1} parent=1 // pred_check
      _
    $region23: #{ethical_principle_encode.1} parent=1 // pred_check_branch
      %92 = sbr.rel (0) target = $region25
    $region24: #{ethical_principle_encode.1} parent=1 // pred_region
      _
    $region25: #{ethical_principle_encode.1} parent=1 // pred_fallthru
      _
    %93 = vsyncpa [#allocation3], 1

</llo_original>
